<compile_context>
chip_gen: v7x
topology: tpu7x:2x2x1
jax: 0.10.0
libtpu: 0.0.40
codegen_flags: <defaults>
</compile_context>

<pallas_src>
import functools

import jax
import jax.numpy as jnp
from jax.experimental import pallas as pl
from jax.experimental.pallas import tpu as pltpu

_VMEM_BLOCK_BUDGET = 12 * 1024 * 1024   # target for 2 operands x 2 pipeline buffers
_VMEM_LIMIT_BYTES = 32 * 1024 * 1024    # scoped-VMEM ceiling; <= physical on all gens


def chomp1d_fused(x, chomp_size):
    """Recommended production path: a fusable slice, zero extra HBM traffic."""
    return x[:, :, : x.shape[2] - chomp_size]


def _chomp_copy_kernel(x_ref, o_ref):
    # Lane-dense path: input and output tiles cover the same (row, time) window.
    o_ref[...] = x_ref[...]


def _chomp_slice_kernel(x_ref, o_ref, *, t_out):
    # Small-time path: row tile holds the full input time axis; keep first t_out cols.
    o_ref[...] = x_ref[:, :t_out]


def _sublane_multiple(itemsize):
    # f32 -> 8, bf16 -> 16, int8/fp8 -> 32 (packed sublanes).
    return max(8, 32 // itemsize)


def _round_down(v, mult):
    return max(mult, (v // mult) * mult)


def chomp1d(x, chomp_size):
    """x: (batch, channels, time) -> x[:, :, :time - chomp_size], materialized."""
    if chomp_size < 0:
        raise ValueError("chomp_size must be non-negative")
    b, c, t = x.shape
    if chomp_size == 0:
        # Documented choice: the module's intent is "trim trailing padding"; with
        # chomp_size == 0 we return x unchanged (PyTorch's literal `[: -0]` would
        # be empty, which is never the intended use).
        return x
    if chomp_size >= t:
        raise ValueError(f"chomp_size ({chomp_size}) must be < time ({t})")

    t_out = t - chomp_size
    m = b * c
    itemsize = jnp.dtype(x.dtype).itemsize
    sub = _sublane_multiple(itemsize)
    x2 = x.reshape(m, t)  # row-major view; no data movement

    cost = pl.CostEstimate(flops=0, transcendentals=0,
                           bytes_accessed=2 * m * t_out * itemsize)

    if t_out >= 128:
        per_block = _VMEM_BLOCK_BUDGET // 4  # 2 arrays x 2 pipeline buffers
        tt_full = pl.cdiv(t_out, 128) * 128
        if tt_full * sub * itemsize <= per_block:
            tt = tt_full                      # whole output row per block
        else:
            tt = _round_down(min(2048, per_block // (sub * itemsize)), 128)
        tm = _round_down(per_block // (tt * itemsize), sub)
        if tm >= m:
            tm = m                            # full-extent dim is always legal

        out2 = pl.pallas_call(
            _chomp_copy_kernel,
            out_shape=jax.ShapeDtypeStruct((m, t_out), x.dtype),
            grid_spec=pltpu.PrefetchScalarGridSpec(
                num_scalar_prefetch=0,
                grid=(pl.cdiv(m, tm), pl.cdiv(t_out, tt)),
                in_specs=[pl.BlockSpec((tm, tt), lambda i, j: (i, j))],
                out_specs=pl.BlockSpec((tm, tt), lambda i, j: (i, j)),
            ),
            compiler_params=pltpu.CompilerParams(
                dimension_semantics=("parallel", "parallel"),
                vmem_limit_bytes=_VMEM_LIMIT_BYTES),
            cost_estimate=cost,
        )(x2)
    else:
        # Tiny time axis: full-time blocks (exempt from the 128 rule), tile rows
        # aggressively so per-step overhead is amortized.
        tm = _VMEM_BLOCK_BUDGET // (2 * (t + t_out) * itemsize)
        tm = _round_down(min(tm, 8192), sub)
        if tm >= m:
            tm = m

        out2 = pl.pallas_call(
            functools.partial(_chomp_slice_kernel, t_out=t_out),
            out_shape=jax.ShapeDtypeStruct((m, t_out), x.dtype),
            grid_spec=pltpu.PrefetchScalarGridSpec(
                num_scalar_prefetch=0,
                grid=(pl.cdiv(m, tm),),
                in_specs=[pl.BlockSpec((tm, t), lambda i: (i, 0))],
                out_specs=pl.BlockSpec((tm, t_out), lambda i: (i, 0)),
            ),
            compiler_params=pltpu.CompilerParams(
                dimension_semantics=("parallel",),
                vmem_limit_bytes=_VMEM_LIMIT_BYTES),
            cost_estimate=cost,
        )(x2)

    return out2.reshape(b, c, t_out)


if __name__ == "__main__":
    # Small shape consistent with the module: (batch, channels, time).
    batch, channels, time_len = 2, 4, 16
    chomp_size = 2
    x = jax.random.normal(jax.random.PRNGKey(0), (batch, channels, time_len),
                          jnp.float32)
    out = jax.block_until_ready(chomp1d(x, chomp_size))
    assert out.shape == (batch, channels, time_len - chomp_size)
    assert jnp.array_equal(out, x[:, :, :-chomp_size])

    # Lane-dense path, single full-row block per row tile (tt rounded to 640).
    x1 = jax.random.normal(jax.random.PRNGKey(1), (4, 160, 640), jnp.float32)
    assert jnp.array_equal(jax.block_until_ready(chomp1d(x1, 3)), x1[:, :, :-3])

    # Lane-dense path where the 128-rounded time block (256) exceeds T (200):
    # exercises padded input reads and masked output tail.
    x2 = jax.random.normal(jax.random.PRNGKey(2), (3, 16, 200), jnp.float32)
    assert jnp.array_equal(jax.block_until_ready(chomp1d(x2, 10)), x2[:, :, :-10])

    # Lane-dense path with multiple pipelined row tiles (partial last row tile).
    x3 = jax.random.normal(jax.random.PRNGKey(3), (4, 256, 1024), jnp.float32)
    assert jnp.array_equal(jax.block_until_ready(chomp1d(x3, 3)), x3[:, :, :-3])

    # Small-time fallback with multiple large row tiles.
    x4 = jax.random.normal(jax.random.PRNGKey(4), (16, 600, 20), jnp.float32)
    assert jnp.array_equal(jax.block_until_ready(chomp1d(x4, 4)), x4[:, :, :-4])

    print("KERNEL_OK")
</pallas_src>

<mosaic_0001>
module attributes {stable_mosaic.version = 11 : i64} {
  func.func @_chomp_slice_kernel(%arg0: i32, %arg1: memref<8x16xf32, #tpu.memory_space<vmem>>, %arg2: memref<8x14xf32, #tpu.memory_space<vmem>>) attributes {dimension_semantics = [#tpu.dimension_semantics<parallel>], iteration_bounds = array<i64: 1>, scalar_prefetch = 0 : i64, scratch_operands = 0 : i64, tpu.core_type = #tpu.core_type<tc>, window_params = [{transform_indices = @transform_0, window_bounds = array<i64: 8, 16>}, {transform_indices = @transform_1, window_bounds = array<i64: 8, 14>}]} {
    %c0 = arith.constant 0 : index
    %c0_0 = arith.constant 0 : index
    %0 = vector.load %arg1[%c0, %c0_0] : memref<8x16xf32, #tpu.memory_space<vmem>>, vector<8x14xf32>
    %c0_1 = arith.constant 0 : index
    %c0_2 = arith.constant 0 : index
    %1 = vector.load %arg2[%c0_1, %c0_2] : memref<8x14xf32, #tpu.memory_space<vmem>>, vector<8x14xf32>
    tpu.vector_store %arg2[%c0_1, %c0_2], %0 {strides = array<i32>} : memref<8x14xf32, #tpu.memory_space<vmem>>, vector<8x14xf32>,
    return
  }
  func.func @transform_0(%arg0: i32) -> (i32, i32) {
    %c0_i32 = arith.constant 0 : i32
    %c0_i32_0 = arith.constant 0 : i32
    return %arg0, %c0_i32 : i32, i32
  }
  func.func @transform_1(%arg0: i32) -> (i32, i32) {
    %c0_i32 = arith.constant 0 : i32
    %c0_i32_0 = arith.constant 0 : i32
    return %arg0, %c0_i32 : i32, i32
  }
}

</mosaic_0001>

<llo_original>
// kernel: tpu_custom_call.1
$region0: #{tpu_custom_call.1}
  #allocation0 [shape = 'u32[]', space=smem, size = 0x4, offset = 0x4, fixed_abs, tag = 'smem constant byte address 0x4 - core index']
  #allocation1 [shape = 'u32[144,128]{1,0:T(1,128)}', space=vmem, size = 0x12000, scoped, tag = 'internal scratch']
  %s0 = inlined_call_operand.hbm [shape: f32[8,16], index: 0, kind: input, shape index: {}]
  %s1 = inlined_call_operand.hbm [shape: f32[8,14], index: 1, kind: output, shape index: {}]
  %s2 = sld [smem:[#allocation0]]
  $region18: #{tpu_custom_call.1} parent=0
    _
  %s4 = ssub.s32 1, %s2
  %s5 = scalar_select 0, %s4, %s2
  $region1: #{tpu_custom_call.1} parent=0
    #allocation2 [shape = 'u8[4096]{0}', space=vmem, size = 0x1000, scoped, tag = 'input window, operand 0, single buffered']
    #allocation3 [shape = 's32[1]{0}', space=sflag, size = 0x4, scoped, tag = 'scoped memory for tpu_custom_call.1']
    #allocation4 [shape = 's32[1]{0}', space=sflag, size = 0x4, scoped, tag = 'scoped memory for tpu_custom_call.1']
    #allocation5 [shape = 'u8[4096]{0}', space=vmem, size = 0x1000, scoped, tag = 'output window, operand 0, single buffered']
    %6 = vsyncpa [#allocation3], 0
    %7 = vsyncpa [#allocation4], 0
    // Predicated region
    $region2: #{tpu_custom_call.1} parent=1 // pred_check
      _
    $region3: #{tpu_custom_call.1} parent=1 // pred_check_branch
      %9 = sbr.rel (0) target = $region5
    $region4: #{tpu_custom_call.1} parent=1 // pred_region
      %s11 = ssub.s32 128, 128
      %12 = vsyncadd [#allocation3], %s11
      %s14 = sshll.u32 [#allocation2], 4
      %s15 = int_to_ptr.vmem [resolvable:$true] %s14
      %17 = dma.hbm_to_vmem [thread:$0]  %s0, 128, %s15, [#allocation3]
    $region5: #{tpu_custom_call.1} parent=1 // pred_fallthru
      _
    // Predicated region
    $region6: #{tpu_custom_call.1} parent=1 // pred_check
      _
    $region7: #{tpu_custom_call.1} parent=1 // pred_check_branch
      %19 = sbr.rel (0) target = $region9
    $region8: #{tpu_custom_call.1} parent=1 // pred_region
      %20 = dma.done [#allocation3], 128
    $region9: #{tpu_custom_call.1} parent=1 // pred_fallthru
      _
    %v21 = vld [vmem:[#allocation2] sm:$0xff]
    %vm22 = vcmask 113664
    %23 = vst.msk [vmem:[#allocation5] sm:$0xff] %vm22, %v21
    // Predicated region
    $region10: #{tpu_custom_call.1} parent=1 // pred_check
      _
    $region11: #{tpu_custom_call.1} parent=1 // pred_check_branch
      %25 = sbr.rel (0) target = $region13
    $region12: #{tpu_custom_call.1} parent=1 // pred_region
      %s27 = ssub.s32 128, 128
      %28 = vsyncadd [#allocation4], %s27
      %s30 = sshll.u32 [#allocation5], 4
      %s31 = int_to_ptr.vmem [resolvable:$true] %s30
      %33 = dma.vmem_to_hbm [thread:$0]  %s31, 128, %s1, [#allocation4]
    $region13: #{tpu_custom_call.1} parent=1 // pred_fallthru
      _
    // Predicated region
    $region14: #{tpu_custom_call.1} parent=1 // pred_check
      _
    $region15: #{tpu_custom_call.1} parent=1 // pred_check_branch
      %35 = sbr.rel (0) target = $region17
    $region16: #{tpu_custom_call.1} parent=1 // pred_region
      %36 = dma.done [#allocation4], 128
    $region17: #{tpu_custom_call.1} parent=1 // pred_fallthru
      _
    %37 = vsyncpa [#allocation3], 1
    %38 = vsyncpa [#allocation4], 1

</llo_original>
